<compile_context>
chip_gen: v5e
topology: v5e:2x2
jax: 0.10.0
libtpu: 0.0.40
codegen_flags: <defaults>
</compile_context>

<pallas_src>
import math

import jax
import jax.numpy as jnp
from jax.experimental import pallas as pl
from jax.experimental.pallas import tpu as pltpu


def _round_up(x, m):
    return ((x + m - 1) // m) * m


def _generator_kernel(z_ref, w1_ref, b1_ref, w2_ref, s2_ref, b2_ref, o_ref):
    # fc1: tiny matmul on VMEM-resident operands (recomputed per N tile; free
    # under the streamed-w2 DMA, and trivially correct under core sharding).
    h = jnp.dot(z_ref[...], w1_ref[...], preferred_element_type=jnp.float32)
    h = jnp.maximum(h + b1_ref[...], 0.0)                       # f32 VPU
    # fc2 on this N tile.  w2 arrives as int8 (quantized, per-column scales in
    # s2) or bf16 (s2 == 1).  int8 values |q| <= 127 are exact in bf16, so the
    # MXU always runs bf16 x bf16 with f32 accumulation — portable to every
    # TPU generation (no integer / fp8 MXU dependence).
    w2 = w2_ref[...].astype(jnp.bfloat16)
    o = jnp.dot(h.astype(jnp.bfloat16), w2, preferred_element_type=jnp.float32)
    o = o * s2_ref[...] + b2_ref[...]                           # dequant + bias (f32)
    o_ref[...] = jnp.tanh(o).astype(o_ref.dtype)                # f32 EUP tanh


def _vmem_limit_bytes():
    """<= 3/4 of min(reported VMEM, 64 MiB) == at most 48 MiB.

    get_tpu_info() may report per-chip (128 MiB) rather than per-TC (64 MiB)
    capacity on v7x, so clamp to the 64 MiB per-TC worst case before taking
    3/4 for double-buffer / compiler-scratch headroom.  v5e/v6e need far less
    than 48 MiB for this kernel, so the clamp costs nothing there.
    """
    try:
        cap = int(pltpu.get_tpu_info().vmem_capacity_bytes)
    except Exception:
        cap = 64 << 20
    cap = min(cap, 64 << 20)
    return (cap * 3) // 4


def _pick_tile_n(n_pad, hidden, b_pad, vmem_limit, w2_bytes_per_elem):
    """Lane-aligned N tile that (a) fits the VMEM budget double-buffered and
    (b) prefers >= 4 (even) tiles, then >= 2 tiles, so both v7x TensorCores
    get work and single-TC chips get DMA/compute overlap."""
    budget = vmem_limit // 2  # leave room for resident z/w1/b1 + compiler scratch

    def fits(tn):
        need = 2 * (hidden * tn * w2_bytes_per_elem   # streamed w2 tile
                    + 2 * tn * 4                      # scale + bias tiles (f32)
                    + b_pad * tn * 4)                 # output tile (f32)
        return need <= budget

    candidates = [c for c in (4096, 2048, 1024, 512, 256, 128)
                  if n_pad % c == 0 and fits(c)]
    if not candidates:
        return 128
    for tn in candidates:                 # largest tile with >= 4 even tiles
        nt = n_pad // tn
        if nt >= 4 and nt % 2 == 0:
            return tn
    for tn in candidates:                 # else: largest tile with >= 2 tiles
        if n_pad // tn >= 2:
            return tn
    return candidates[-1]                 # else (e.g. n_pad == 128): 1 tile


def generator_forward(z, w1, b1, w2, b2, output_shape, w2_mode="int8"):
    """Fused 2-layer MLP generator: tanh(relu(z@w1 + b1) @ w2 + b2)."""
    B, L = z.shape
    H = w1.shape[1]
    N = w2.shape[1]
    assert N == math.prod(output_shape)

    # --- host-side prep ----------------------------------------------------
    # Batch: pad to a multiple of 16 (bf16 packs 16 sublanes/vreg; also
    # satisfies the f32 output's multiple-of-8 sublane density).
    B_pad = max(16, _round_up(B, 16))
    if B_pad != B:
        z = jnp.pad(z, ((0, B_pad - B), (0, 0)))

    z_bf = z.astype(jnp.bfloat16)
    w1_bf = w1.astype(jnp.bfloat16)
    b1 = b1.astype(jnp.float32)
    b2 = b2.astype(jnp.float32)

    # w2 stream: int8 + per-column scale (default) or plain bf16.
    if w2_mode == "int8":
        amax = jnp.max(jnp.abs(w2), axis=0, keepdims=True)            # (1, N)
        s2 = (jnp.maximum(amax, 1e-30) / 127.0).astype(jnp.float32)
        w2_s = jnp.clip(jnp.round(w2 / s2), -127.0, 127.0).astype(jnp.int8)
        w2_bytes = 1
    else:
        w2_s = w2.astype(jnp.bfloat16)
        s2 = jnp.ones((1, N), jnp.float32)
        w2_bytes = 2

    # Output features: pad to a multiple of 128 (lane-dense tiles, cdiv grid).
    N_pad = _round_up(N, 128)
    if N_pad != N:
        w2_s = jnp.pad(w2_s, ((0, 0), (0, N_pad - N)))
        s2 = jnp.pad(s2, ((0, 0), (0, N_pad - N)))
        b2 = jnp.pad(b2, ((0, 0), (0, N_pad - N)))

    vmem_limit = _vmem_limit_bytes()
    tn = _pick_tile_n(N_pad, H, B_pad, vmem_limit, w2_bytes)
    grid = (N_pad // tn,)

    # --- pallas call --------------------------------------------------------
    out_flat = pl.pallas_call(
        _generator_kernel,
        out_shape=jax.ShapeDtypeStruct((B_pad, N_pad), jnp.float32),
        grid_spec=pltpu.PrefetchScalarGridSpec(
            num_scalar_prefetch=0,
            grid=grid,
            in_specs=[
                pl.BlockSpec((B_pad, L), lambda j: (0, 0)),   # z   (resident)
                pl.BlockSpec((L, H), lambda j: (0, 0)),       # w1  (resident)
                pl.BlockSpec((1, H), lambda j: (0, 0)),       # b1  (resident)
                pl.BlockSpec((H, tn), lambda j: (0, j)),      # w2  (streamed)
                pl.BlockSpec((1, tn), lambda j: (0, j)),      # s2  (streamed)
                pl.BlockSpec((1, tn), lambda j: (0, j)),      # b2  (streamed)
            ],
            out_specs=pl.BlockSpec((B_pad, tn), lambda j: (0, j)),
        ),
        compiler_params=pltpu.CompilerParams(
            # "parallel" is the documented way to let the runtime shard grid
            # axes across TensorCores; all tiles are fully independent.
            dimension_semantics=("parallel",),
            vmem_limit_bytes=vmem_limit,
        ),
    )(z_bf, w1_bf, b1, w2_s, s2, b2)

    out_flat = out_flat[:B, :N]
    return out_flat.reshape((B,) + tuple(output_shape))


def init_generator_params(key, latent_dim, output_shape):
    """nn.Linear-style U(-1/sqrt(fan_in), 1/sqrt(fan_in)) init."""
    hidden = 1024
    n_out = math.prod(output_shape)
    k1, k2, k3, k4 = jax.random.split(key, 4)
    bound1 = 1.0 / math.sqrt(latent_dim)
    bound2 = 1.0 / math.sqrt(hidden)
    w1 = jax.random.uniform(k1, (latent_dim, hidden), jnp.float32, -bound1, bound1)
    b1 = jax.random.uniform(k2, (1, hidden), jnp.float32, -bound1, bound1)
    w2 = jax.random.uniform(k3, (hidden, n_out), jnp.float32, -bound2, bound2)
    b2 = jax.random.uniform(k4, (1, n_out), jnp.float32, -bound2, bound2)
    return w1, b1, w2, b2


if __name__ == "__main__":
    latent_dim = 32
    output_shape = (2, 8, 8)   # prod = 128
    batch = 2

    key = jax.random.PRNGKey(0)
    k_z, k_params = jax.random.split(key)
    z = jax.random.normal(k_z, (batch, latent_dim), jnp.float32)
    w1, b1, w2, b2 = init_generator_params(k_params, latent_dim, output_shape)

    out = generator_forward(z, w1, b1, w2, b2, output_shape)
    out = jax.block_until_ready(out)
    assert out.shape == (batch,) + output_shape

    # Reference 1: same numerics as the kernel (bf16 operands / f32 accumulate,
    # int8-quantized w2 with per-column scales) — tight tolerance.
    amax = jnp.max(jnp.abs(w2), axis=0, keepdims=True)
    s2 = jnp.maximum(amax, 1e-30) / 127.0
    w2_q = jnp.clip(jnp.round(w2 / s2), -127.0, 127.0).astype(jnp.int8)
    h_ref = jnp.maximum(
        jnp.dot(z.astype(jnp.bfloat16), w1.astype(jnp.bfloat16),
                preferred_element_type=jnp.float32) + b1, 0.0)
    pre = jnp.dot(h_ref.astype(jnp.bfloat16), w2_q.astype(jnp.bfloat16),
                  preferred_element_type=jnp.float32) * s2 + b2
    ref_matched = jnp.tanh(pre).reshape((batch,) + output_shape)
    assert jnp.allclose(out, ref_matched, atol=5e-3, rtol=5e-3), (
        float(jnp.max(jnp.abs(out - ref_matched))))

    # Reference 2: the original module's full-precision forward (semantics
    # check; tolerance covers bf16 + int8 weight quantization error).
    h_fp = jnp.maximum(jnp.dot(z, w1) + b1, 0.0)
    ref_fp = jnp.tanh(jnp.dot(h_fp, w2) + b2).reshape((batch,) + output_shape)
    assert jnp.allclose(out, ref_fp, atol=2.5e-2, rtol=2.5e-2), (
        float(jnp.max(jnp.abs(out - ref_fp))))

    print("KERNEL_OK")
</pallas_src>

<mosaic_0001>
module attributes {stable_mosaic.version = 11 : i64} {
  func.func @_generator_kernel(%arg0: i32, %arg1: memref<16x32xbf16, #tpu.memory_space<vmem>>, %arg2: memref<32x1024xbf16, #tpu.memory_space<vmem>>, %arg3: memref<1x1024xf32, #tpu.memory_space<vmem>>, %arg4: memref<1024x128xi8, #tpu.memory_space<vmem>>, %arg5: memref<1x128xf32, #tpu.memory_space<vmem>>, %arg6: memref<1x128xf32, #tpu.memory_space<vmem>>, %arg7: memref<16x128xf32, #tpu.memory_space<vmem>>) attributes {dimension_semantics = [#tpu.dimension_semantics<parallel>], iteration_bounds = array<i64: 1>, scalar_prefetch = 0 : i64, scratch_operands = 0 : i64, tpu.core_type = #tpu.core_type<tc>, window_params = [{pipeline_mode = #tpu.pipeline_mode<synchronous>, transform_indices = @transform_0, window_bounds = array<i64: 16, 32>}, {pipeline_mode = #tpu.pipeline_mode<synchronous>, transform_indices = @transform_1, window_bounds = array<i64: 32, 1024>}, {pipeline_mode = #tpu.pipeline_mode<synchronous>, transform_indices = @transform_2, window_bounds = array<i64: 1, 1024>}, {transform_indices = @transform_3, window_bounds = array<i64: 1024, 128>}, {transform_indices = @transform_4, window_bounds = array<i64: 1, 128>}, {transform_indices = @transform_5, window_bounds = array<i64: 1, 128>}, {transform_indices = @transform_6, window_bounds = array<i64: 16, 128>}]} {
    %c0 = arith.constant 0 : index
    %c0_0 = arith.constant 0 : index
    %0 = vector.load %arg1[%c0, %c0_0] : memref<16x32xbf16, #tpu.memory_space<vmem>>, vector<16x32xbf16>
    %c0_1 = arith.constant 0 : index
    %c0_2 = arith.constant 0 : index
    %1 = vector.load %arg2[%c0_1, %c0_2] : memref<32x1024xbf16, #tpu.memory_space<vmem>>, vector<32x1024xbf16>
    %cst = arith.constant dense<0.000000e+00> : vector<16x1024xf32>
    %2 = tpu.matmul %0, %1, %cst {dimension_numbers = #tpu.dot_dimension_numbers<[1], [0], [0], [1], [0, 0, 1, 1], [], []>} : vector<16x32xbf16>, vector<32x1024xbf16>, vector<16x1024xf32> -> vector<16x1024xf32>
    %c0_3 = arith.constant 0 : index
    %c0_4 = arith.constant 0 : index
    %3 = vector.load %arg3[%c0_3, %c0_4] : memref<1x1024xf32, #tpu.memory_space<vmem>>, vector<1x1024xf32>
    %4 = vector.broadcast %3 : vector<1x1024xf32> to vector<16x1024xf32>
    %5 = arith.addf %2, %4 : vector<16x1024xf32>
    %cst_5 = arith.constant 0.000000e+00 : f32
    %6 = vector.broadcast %cst_5 : f32 to vector<16x1024xf32>
    %7 = arith.maximumf %5, %6 : vector<16x1024xf32>
    %c0_6 = arith.constant 0 : index
    %c0_7 = arith.constant 0 : index
    %8 = vector.load %arg4[%c0_6, %c0_7] : memref<1024x128xi8, #tpu.memory_space<vmem>>, vector<1024x128xi8>
    %9 = arith.sitofp %8 : vector<1024x128xi8> to vector<1024x128xbf16>
    %10 = arith.truncf %7 : vector<16x1024xf32> to vector<16x1024xbf16>
    %cst_8 = arith.constant dense<0.000000e+00> : vector<16x128xf32>
    %11 = tpu.matmul %10, %9, %cst_8 {dimension_numbers = #tpu.dot_dimension_numbers<[1], [0], [0], [1], [0, 0, 1, 1], [], []>} : vector<16x1024xbf16>, vector<1024x128xbf16>, vector<16x128xf32> -> vector<16x128xf32>
    %c0_9 = arith.constant 0 : index
    %c0_10 = arith.constant 0 : index
    %12 = vector.load %arg5[%c0_9, %c0_10] : memref<1x128xf32, #tpu.memory_space<vmem>>, vector<1x128xf32>
    %13 = vector.broadcast %12 : vector<1x128xf32> to vector<16x128xf32>
    %14 = arith.mulf %11, %13 : vector<16x128xf32>
    %c0_11 = arith.constant 0 : index
    %c0_12 = arith.constant 0 : index
    %15 = vector.load %arg6[%c0_11, %c0_12] : memref<1x128xf32, #tpu.memory_space<vmem>>, vector<1x128xf32>
    %16 = vector.broadcast %15 : vector<1x128xf32> to vector<16x128xf32>
    %17 = arith.addf %14, %16 : vector<16x128xf32>
    %18 = math.tanh %17 : vector<16x128xf32>
    %c0_13 = arith.constant 0 : index
    %c0_14 = arith.constant 0 : index
    %19 = vector.load %arg7[%c0_13, %c0_14] : memref<16x128xf32, #tpu.memory_space<vmem>>, vector<16x128xf32>
    tpu.vector_store %arg7[%c0_13, %c0_14], %18 {strides = array<i32>} : memref<16x128xf32, #tpu.memory_space<vmem>>, vector<16x128xf32>,
    return
  }
  func.func @transform_0(%arg0: i32) -> (i32, i32) {
    %c0_i32 = arith.constant 0 : i32
    %c0_i32_0 = arith.constant 0 : i32
    %c0_i32_1 = arith.constant 0 : i32
    return %c0_i32, %c0_i32_0 : i32, i32
  }
  func.func @transform_1(%arg0: i32) -> (i32, i32) {
    %c0_i32 = arith.constant 0 : i32
    %c0_i32_0 = arith.constant 0 : i32
    %c0_i32_1 = arith.constant 0 : i32
    return %c0_i32, %c0_i32_0 : i32, i32
  }
  func.func @transform_2(%arg0: i32) -> (i32, i32) {
    %c0_i32 = arith.constant 0 : i32
    %c0_i32_0 = arith.constant 0 : i32
    %c0_i32_1 = arith.constant 0 : i32
    return %c0_i32, %c0_i32_0 : i32, i32
  }
  func.func @transform_3(%arg0: i32) -> (i32, i32) {
    %c0_i32 = arith.constant 0 : i32
    %c0_i32_0 = arith.constant 0 : i32
    return %c0_i32, %arg0 : i32, i32
  }
  func.func @transform_4(%arg0: i32) -> (i32, i32) {
    %c0_i32 = arith.constant 0 : i32
    %c0_i32_0 = arith.constant 0 : i32
    return %c0_i32, %arg0 : i32, i32
  }
  func.func @transform_5(%arg0: i32) -> (i32, i32) {
    %c0_i32 = arith.constant 0 : i32
    %c0_i32_0 = arith.constant 0 : i32
    return %c0_i32, %arg0 : i32, i32
  }
  func.func @transform_6(%arg0: i32) -> (i32, i32) {
    %c0_i32 = arith.constant 0 : i32
    %c0_i32_0 = arith.constant 0 : i32
    return %c0_i32, %arg0 : i32, i32
  }
}

</mosaic_0001>

<llo_original>
// kernel: tpu_custom_call.1
$region0: #{tpu_custom_call.1}
  #allocation0 [shape = 'u32[]', space=smem, size = 0x4, offset = 0x4, fixed_abs, tag = 'smem constant byte address 0x4 - core index']
  #allocation1 [shape = 'u32[72,128]{1,0:T(1,128)}', space=vmem, size = 0x9000, scoped, tag = 'internal scratch']
  %s0 = inlined_call_operand.hbm [shape: bf16[16,32], index: 0, kind: input, shape index: {}]
  %s1 = inlined_call_operand.hbm [shape: bf16[32,1024], index: 1, kind: input, shape index: {}]
  %s2 = inlined_call_operand.hbm [shape: f32[1,1024], index: 2, kind: input, shape index: {}]
  %s3 = inlined_call_operand.hbm [shape: s8[1024,128], index: 3, kind: input, shape index: {}]
  %s4 = inlined_call_operand.vmem [shape: f32[1,128], index: 4, kind: input, shape index: {}]
  %s5 = inlined_call_operand.vmem [shape: f32[1,128], index: 5, kind: input, shape index: {}]
  %s6 = inlined_call_operand.hbm [shape: f32[16,128], index: 6, kind: output, shape index: {}]
  %s7 = sld [smem:[#allocation0]]
  $region50: #{tpu_custom_call.1} parent=0
    _
  %s9 = ssub.s32 1, %s7
  %s10 = scalar_select 0, %s9, %s7
  $region1: #{tpu_custom_call.1} parent=0
    #allocation2 [shape = 'u8[4096]{0}', space=vmem, size = 0x1000, scoped, tag = 'input window, operand 0, single buffered']
    #allocation3 [shape = 's32[1]{0}', space=sflag, size = 0x4, scoped, tag = 'scoped memory for tpu_custom_call.1']
    #allocation4 [shape = 's32[1]{0}', space=sflag, size = 0x4, scoped, tag = 'scoped memory for tpu_custom_call.1']
    #allocation5 [shape = 'u8[65536]{0}', space=vmem, size = 0x10000, scoped, tag = 'input window, operand 1, single buffered']
    #allocation6 [shape = 's32[1]{0}', space=sflag, size = 0x4, scoped, tag = 'scoped memory for tpu_custom_call.1']
    #allocation7 [shape = 'u8[4096]{0}', space=vmem, size = 0x1000, scoped, tag = 'input window, operand 2, single buffered']
    #allocation8 [shape = 'u8[131072]{0}', space=vmem, size = 0x20000, scoped, tag = 'input window, operand 3, single buffered']
    #allocation9 [shape = 's32[1]{0}', space=sflag, size = 0x4, scoped, tag = 'scoped memory for tpu_custom_call.1']
    #allocation10 [shape = 'u8[8192]{0}', space=vmem, size = 0x2000, scoped, tag = 'output window, operand 0, single buffered']
    %11 = vsyncpa [#allocation3], 0
    %12 = vsyncpa [#allocation6], 0
    %13 = vsyncpa [#allocation9], 0
    %14 = vsyncpa [#allocation4], 0
    // Predicated region
    $region2: #{tpu_custom_call.1} parent=1 // pred_check
      _
    $region3: #{tpu_custom_call.1} parent=1 // pred_check_branch
      %16 = sbr.rel (0) target = $region5
    $region4: #{tpu_custom_call.1} parent=1 // pred_region
      %18 = vsyncadd [#allocation3], 0
      %s19 = sshll.u32 %s0, 4
      %s20 = int_to_ptr.hbm [resolvable:$true] %s19
      %s21 = sshll.u32 [#allocation2], 4
      %s22 = int_to_ptr.vmem [resolvable:$true] %s21
      %27 = dma.hbm_to_vmem [thread:$0]  %s20, 128, %s22, [#allocation3], 64, 64, 4
    $region5: #{tpu_custom_call.1} parent=1 // pred_fallthru
      _
    // Predicated region
    $region6: #{tpu_custom_call.1} parent=1 // pred_check
      _
    $region7: #{tpu_custom_call.1} parent=1 // pred_check_branch
      %29 = sbr.rel (0) target = $region9
    $region8: #{tpu_custom_call.1} parent=1 // pred_region
      %31 = vsyncadd [#allocation6], 0
      %s32 = sshll.u32 %s1, 4
      %s33 = int_to_ptr.hbm [resolvable:$true] %s32
      %s34 = sshll.u32 [#allocation5], 4
      %s35 = int_to_ptr.vmem [resolvable:$true] %s34
      %40 = dma.hbm_to_vmem [thread:$0]  %s33, 2048, %s35, [#allocation6], 512, 512, 32
    $region9: #{tpu_custom_call.1} parent=1 // pred_fallthru
      _
    // Predicated region
    $region10: #{tpu_custom_call.1} parent=1 // pred_check
      _
    $region11: #{tpu_custom_call.1} parent=1 // pred_check_branch
      %42 = sbr.rel (0) target = $region13
    $region12: #{tpu_custom_call.1} parent=1 // pred_region
      %44 = vsyncadd [#allocation6], 0
      %s46 = sshll.u32 %s2, 4
      %s47 = int_to_ptr.hbm [resolvable:$true] %s46
      %s48 = sshll.u32 [#allocation7], 4
      %s49 = int_to_ptr.vmem [resolvable:$true] %s48
      %51 = dma.hbm_to_vmem [thread:$0]  %s47, 128, %s49, [#allocation6]
    $region13: #{tpu_custom_call.1} parent=1 // pred_fallthru
      _
    // Predicated region
    $region14: #{tpu_custom_call.1} parent=1 // pred_check
      _
    $region15: #{tpu_custom_call.1} parent=1 // pred_check_branch
      %53 = sbr.rel (0) target = $region17
    $region16: #{tpu_custom_call.1} parent=1 // pred_region
      %55 = vsyncadd [#allocation9], 0
      %s56 = sshll.u32 %s3, 4
      %s57 = int_to_ptr.hbm [resolvable:$true] %s56
      %s58 = sshll.u32 [#allocation8], 4
      %s59 = int_to_ptr.vmem [resolvable:$true] %s58
      %64 = dma.hbm_to_vmem [thread:$0]  %s57, 4096, %s59, [#allocation9], 128, 128, 8
    $region17: #{tpu_custom_call.1} parent=1 // pred_fallthru
      _
    // Predicated region
    $region18: #{tpu_custom_call.1} parent=1 // pred_check
      _
    $region19: #{tpu_custom_call.1} parent=1 // pred_check_branch
      %66 = sbr.rel (0) target = $region21
    $region20: #{tpu_custom_call.1} parent=1 // pred_region
      _
    $region21: #{tpu_custom_call.1} parent=1 // pred_fallthru
      _
    // Predicated region
    $region22: #{tpu_custom_call.1} parent=1 // pred_check
      _
    $region23: #{tpu_custom_call.1} parent=1 // pred_check_branch
      %68 = sbr.rel (0) target = $region25
    $region24: #{tpu_custom_call.1} parent=1 // pred_region
      _
    $region25: #{tpu_custom_call.1} parent=1 // pred_fallthru
      _
    // Predicated region
    $region26: #{tpu_custom_call.1} parent=1 // pred_check
      _
    $region27: #{tpu_custom_call.1} parent=1 // pred_check_branch
      %70 = sbr.rel (0) target = $region29
    $region28: #{tpu_custom_call.1} parent=1 // pred_region
      %72 = dma.done [#allocation3], 128
    $region29: #{tpu_custom_call.1} parent=1 // pred_fallthru
      _
    // Predicated region
    $region30: #{tpu_custom_call.1} parent=1 // pred_check
      _
    $region31: #{tpu_custom_call.1} parent=1 // pred_check_branch
      %74 = sbr.rel (0) target = $region33
    $region32: #{tpu_custom_call.1} parent=1 // pred_region
      %76 = dma.done [#allocation6], 2048
    $region33: #{tpu_custom_call.1} parent=1 // pred_fallthru
      _
    // Predicated region
    $region34: #{tpu_custom_call.1} parent=1 // pred_check
      _
    $region35: #{tpu_custom_call.1} parent=1 // pred_check_branch
      %78 = sbr.rel (0) target = $region37
    $region36: #{tpu_custom_call.1} parent=1 // pred_region
      %80 = dma.done [#allocation6], 128
    $region37: #{tpu_custom_call.1} parent=1 // pred_fallthru
      _
    // Predicated region
    $region38: #{tpu_custom_call.1} parent=1 // pred_check
      _
    $region39: #{tpu_custom_call.1} parent=1 // pred_check_branch
      %82 = sbr.rel (0) target = $region41
    $region40: #{tpu_custom_call.1} parent=1 // pred_region
      %84 = dma.done [#allocation9], 4096
    $region41: #{tpu_custom_call.1} parent=1 // pred_fallthru
      _
    %v86 = vld [vmem:[#allocation2] sm:$0xf]
    %v87 = vld [vmem:[#allocation2 + $0x4] sm:$0xf]
    %v88 = vld [vmem:[#allocation5] sm:$0xff]
    %v89 = vld [vmem:[#allocation5 + $0x8] sm:$0xff]
    %v90 = vld [vmem:[#allocation5 + $0x10] sm:$0xff]
    %v91 = vld [vmem:[#allocation5 + $0x18] sm:$0xff]
    %v92 = vld [vmem:[#allocation5 + $0x20] sm:$0xff]
    %v93 = vld [vmem:[#allocation5 + $0x28] sm:$0xff]
    %v94 = vld [vmem:[#allocation5 + $0x30] sm:$0xff]
    %v95 = vld [vmem:[#allocation5 + $0x38] sm:$0xff]
    %v96 = vld [vmem:[#allocation5 + $0x40] sm:$0xff]
    %v97 = vld [vmem:[#allocation5 + $0x48] sm:$0xff]
    %v98 = vld [vmem:[#allocation5 + $0x50] sm:$0xff]
    %v99 = vld [vmem:[#allocation5 + $0x58] sm:$0xff]
    %v100 = vld [vmem:[#allocation5 + $0x60] sm:$0xff]
    %v101 = vld [vmem:[#allocation5 + $0x68] sm:$0xff]
    %v102 = vld [vmem:[#allocation5 + $0x70] sm:$0xff]
    %v103 = vld [vmem:[#allocation5 + $0x78] sm:$0xff]
    %v104 = vld [vmem:[#allocation7] sm:$0xff]
    %v106 = vperm.slane %v104, 0
    %v107 = vperm.slane %v104, 1
    %v108 = vperm.slane %v104, 2
    %v109 = vperm.slane %v104, 3
    %v110 = vperm.slane %v104, 4
    %v111 = vperm.slane %v104, 5
    %v112 = vperm.slane %v104, 6
    %v113 = vperm.slane %v104, 7
    %v124 = vunpack.c.l.b16 %v86
    %v125 = vunpack.c.l.b16 %v87
    %v126 = vpack.c.b16 %v125, %v124
    %v143 = vunpack.c.l.b16 %v88
    %v144 = vunpack.c.h.b16 %v88
    %v145 = vunpack.c.l.b16 %v89
    %v146 = vunpack.c.h.b16 %v89
    %v147 = vunpack.c.l.b16 %v90
    %v148 = vunpack.c.h.b16 %v90
    %v149 = vunpack.c.l.b16 %v91
    %v150 = vunpack.c.h.b16 %v91
    %v151 = vunpack.c.l.b16 %v92
    %v152 = vunpack.c.h.b16 %v92
    %v153 = vunpack.c.l.b16 %v93
    %v154 = vunpack.c.h.b16 %v93
    %v155 = vunpack.c.l.b16 %v94
    %v156 = vunpack.c.h.b16 %v94
    %v157 = vunpack.c.l.b16 %v95
    %v158 = vunpack.c.h.b16 %v95
    %v159 = vunpack.c.l.b16 %v96
    %v160 = vunpack.c.h.b16 %v96
    %v161 = vunpack.c.l.b16 %v97
    %v162 = vunpack.c.h.b16 %v97
    %v163 = vunpack.c.l.b16 %v98
    %v164 = vunpack.c.h.b16 %v98
    %v165 = vunpack.c.l.b16 %v99
    %v166 = vunpack.c.h.b16 %v99
    %v167 = vunpack.c.l.b16 %v100
    %v168 = vunpack.c.h.b16 %v100
    %v169 = vunpack.c.l.b16 %v101
    %v170 = vunpack.c.h.b16 %v101
    %v171 = vunpack.c.l.b16 %v102
    %v172 = vunpack.c.h.b16 %v102
    %v173 = vunpack.c.l.b16 %v103
    %v174 = vunpack.c.h.b16 %v103
    %v175 = vpack.c.b16 %v151, %v143
    %v176 = vpack.c.b16 %v152, %v144
    %v177 = vpack.c.b16 %v153, %v145
    %v178 = vpack.c.b16 %v154, %v146
    %v179 = vpack.c.b16 %v155, %v147
    %v180 = vpack.c.b16 %v156, %v148
    %v181 = vpack.c.b16 %v157, %v149
    %v182 = vpack.c.b16 %v158, %v150
    %v183 = vpack.c.b16 %v167, %v159
    %v184 = vpack.c.b16 %v168, %v160
    %v185 = vpack.c.b16 %v169, %v161
    %v186 = vpack.c.b16 %v170, %v162
    %v187 = vpack.c.b16 %v171, %v163
    %v188 = vpack.c.b16 %v172, %v164
    %v189 = vpack.c.b16 %v173, %v165
    %v190 = vpack.c.b16 %v174, %v166
    %vm207 = vcmask 261120
    %v209 = vsel %vm207, %v126, 0
    %211 = vmatpush.bf16.msra.mxu0 0
    %212 = vmatpush.bf16.msra.mxu0 0
    %213 = vmatpush.bf16.msra.mxu0 0
    %214 = vmatpush.bf16.msra.mxu0 0
    %215 = vmatpush.bf16.msra.mxu0 0
    %216 = vmatpush.bf16.msra.mxu0 0
    %217 = vmatpush.bf16.msra.mxu0 %v183
    %218 = vmatpush.bf16.msra.mxu0 %v175
    %219 = vmatmul.bf16.gmra.mxu0 %v209
    %v220 = vpop.f32.mrf.mxu0
    %v221 = vadd.f32 %v106, %v220
    %v222 = vpop.f32.mrf.mxu0
    %v223 = vadd.f32 %v106, %v222
    %224 = vdwg.mxu0
    %225 = vmatpush.bf16.msra.mxu0 0
    %226 = vmatpush.bf16.msra.mxu0 0
    %227 = vmatpush.bf16.msra.mxu0 0
    %228 = vmatpush.bf16.msra.mxu0 0
    %229 = vmatpush.bf16.msra.mxu0 0
    %230 = vmatpush.bf16.msra.mxu0 0
    %231 = vmatpush.bf16.msra.mxu0 %v184
    %232 = vmatpush.bf16.msra.mxu0 %v176
    %233 = vmatmul.bf16.gmra.mxu0 %v209
    %v234 = vpop.f32.mrf.mxu0
    %v235 = vadd.f32 %v107, %v234
    %v236 = vpop.f32.mrf.mxu0
    %v237 = vadd.f32 %v107, %v236
    %238 = vdwg.mxu0
    %239 = vmatpush.bf16.msra.mxu0 0
    %240 = vmatpush.bf16.msra.mxu0 0
    %241 = vmatpush.bf16.msra.mxu0 0
    %242 = vmatpush.bf16.msra.mxu0 0
    %243 = vmatpush.bf16.msra.mxu0 0
    %244 = vmatpush.bf16.msra.mxu0 0
    %245 = vmatpush.bf16.msra.mxu0 %v185
    %246 = vmatpush.bf16.msra.mxu0 %v177
    %247 = vmatmul.bf16.gmra.mxu0 %v209
    %v248 = vpop.f32.mrf.mxu0
    %v249 = vadd.f32 %v108, %v248
    %v250 = vpop.f32.mrf.mxu0
    %v251 = vadd.f32 %v108, %v250
    %252 = vdwg.mxu0
    %253 = vmatpush.bf16.msra.mxu0 0
    %254 = vmatpush.bf16.msra.mxu0 0
    %255 = vmatpush.bf16.msra.mxu0 0
    %256 = vmatpush.bf16.msra.mxu0 0
    %257 = vmatpush.bf16.msra.mxu0 0
    %258 = vmatpush.bf16.msra.mxu0 0
    %259 = vmatpush.bf16.msra.mxu0 %v186
    %260 = vmatpush.bf16.msra.mxu0 %v178
    %261 = vmatmul.bf16.gmra.mxu0 %v209
    %v262 = vpop.f32.mrf.mxu0
    %v263 = vadd.f32 %v109, %v262
    %v264 = vpop.f32.mrf.mxu0
    %v265 = vadd.f32 %v109, %v264
    %266 = vdwg.mxu0
    %267 = vmatpush.bf16.msra.mxu0 0
    %268 = vmatpush.bf16.msra.mxu0 0
    %269 = vmatpush.bf16.msra.mxu0 0
    %270 = vmatpush.bf16.msra.mxu0 0
    %271 = vmatpush.bf16.msra.mxu0 0
    %272 = vmatpush.bf16.msra.mxu0 0
    %273 = vmatpush.bf16.msra.mxu0 %v187
    %274 = vmatpush.bf16.msra.mxu0 %v179
    %275 = vmatmul.bf16.gmra.mxu0 %v209
    %v276 = vpop.f32.mrf.mxu0
    %v277 = vadd.f32 %v110, %v276
    %v278 = vpop.f32.mrf.mxu0
    %v279 = vadd.f32 %v110, %v278
    %280 = vdwg.mxu0
    %281 = vmatpush.bf16.msra.mxu0 0
    %282 = vmatpush.bf16.msra.mxu0 0
    %283 = vmatpush.bf16.msra.mxu0 0
    %284 = vmatpush.bf16.msra.mxu0 0
    %285 = vmatpush.bf16.msra.mxu0 0
    %286 = vmatpush.bf16.msra.mxu0 0
    %287 = vmatpush.bf16.msra.mxu0 %v188
    %288 = vmatpush.bf16.msra.mxu0 %v180
    %289 = vmatmul.bf16.gmra.mxu0 %v209
    %v290 = vpop.f32.mrf.mxu0
    %v291 = vadd.f32 %v111, %v290
    %v292 = vpop.f32.mrf.mxu0
    %v293 = vadd.f32 %v111, %v292
    %294 = vdwg.mxu0
    %295 = vmatpush.bf16.msra.mxu0 0
    %296 = vmatpush.bf16.msra.mxu0 0
    %297 = vmatpush.bf16.msra.mxu0 0
    %298 = vmatpush.bf16.msra.mxu0 0
    %299 = vmatpush.bf16.msra.mxu0 0
    %300 = vmatpush.bf16.msra.mxu0 0
    %301 = vmatpush.bf16.msra.mxu0 %v189
    %302 = vmatpush.bf16.msra.mxu0 %v181
    %303 = vmatmul.bf16.gmra.mxu0 %v209
    %v304 = vpop.f32.mrf.mxu0
    %v305 = vadd.f32 %v112, %v304
    %v306 = vpop.f32.mrf.mxu0
    %v307 = vadd.f32 %v112, %v306
    %308 = vdwg.mxu0
    %309 = vmatpush.bf16.msra.mxu0 0
    %310 = vmatpush.bf16.msra.mxu0 0
    %311 = vmatpush.bf16.msra.mxu0 0
    %312 = vmatpush.bf16.msra.mxu0 0
    %313 = vmatpush.bf16.msra.mxu0 0
    %314 = vmatpush.bf16.msra.mxu0 0
    %315 = vmatpush.bf16.msra.mxu0 %v190
    %316 = vmatpush.bf16.msra.mxu0 %v182
    %317 = vmatmul.bf16.gmra.mxu0 %v209
    %v318 = vpop.f32.mrf.mxu0
    %v319 = vadd.f32 %v113, %v318
    %v320 = vpop.f32.mrf.mxu0
    %v321 = vadd.f32 %v113, %v320
    %322 = vdwg.mxu0
    %v323 = vmax.f32 %v221, 0.0
    %v324 = vmax.f32 %v235, 0.0
    %v325 = vmax.f32 %v249, 0.0
    %v326 = vmax.f32 %v263, 0.0
    %v327 = vmax.f32 %v277, 0.0
    %v328 = vmax.f32 %v291, 0.0
    %v329 = vmax.f32 %v305, 0.0
    %v330 = vmax.f32 %v319, 0.0
    %v331 = vmax.f32 %v223, 0.0
    %v332 = vmax.f32 %v237, 0.0
    %v333 = vmax.f32 %v251, 0.0
    %v334 = vmax.f32 %v265, 0.0
    %v335 = vmax.f32 %v279, 0.0
    %v336 = vmax.f32 %v293, 0.0
    %v337 = vmax.f32 %v307, 0.0
    %v338 = vmax.f32 %v321, 0.0
    %v339 = vld [vmem:[#allocation8] sm:$0xff]
    %v340 = vld [vmem:[#allocation8 + $0x8] sm:$0xff]
    %v341 = vld [vmem:[#allocation8 + $0x10] sm:$0xff]
    %v342 = vld [vmem:[#allocation8 + $0x18] sm:$0xff]
    %v343 = vld [vmem:[#allocation8 + $0x20] sm:$0xff]
    %v344 = vld [vmem:[#allocation8 + $0x28] sm:$0xff]
    %v345 = vld [vmem:[#allocation8 + $0x30] sm:$0xff]
    %v346 = vld [vmem:[#allocation8 + $0x38] sm:$0xff]
    %v347 = vld [vmem:[#allocation8 + $0x40] sm:$0xff]
    %v348 = vld [vmem:[#allocation8 + $0x48] sm:$0xff]
    %v349 = vld [vmem:[#allocation8 + $0x50] sm:$0xff]
    %v350 = vld [vmem:[#allocation8 + $0x58] sm:$0xff]
    %v351 = vld [vmem:[#allocation8 + $0x60] sm:$0xff]
    %v352 = vld [vmem:[#allocation8 + $0x68] sm:$0xff]
    %v353 = vld [vmem:[#allocation8 + $0x70] sm:$0xff]
    %v354 = vld [vmem:[#allocation8 + $0x78] sm:$0xff]
    %v355 = vld [vmem:[#allocation8 + $0x80] sm:$0xff]
    %v356 = vld [vmem:[#allocation8 + $0x88] sm:$0xff]
    %v357 = vld [vmem:[#allocation8 + $0x90] sm:$0xff]
    %v358 = vld [vmem:[#allocation8 + $0x98] sm:$0xff]
    %v359 = vld [vmem:[#allocation8 + $0xa0] sm:$0xff]
    %v360 = vld [vmem:[#allocation8 + $0xa8] sm:$0xff]
    %v361 = vld [vmem:[#allocation8 + $0xb0] sm:$0xff]
    %v362 = vld [vmem:[#allocation8 + $0xb8] sm:$0xff]
    %v363 = vld [vmem:[#allocation8 + $0xc0] sm:$0xff]
    %v364 = vld [vmem:[#allocation8 + $0xc8] sm:$0xff]
    %v365 = vld [vmem:[#allocation8 + $0xd0] sm:$0xff]
    %v366 = vld [vmem:[#allocation8 + $0xd8] sm:$0xff]
    %v367 = vld [vmem:[#allocation8 + $0xe0] sm:$0xff]
    %v368 = vld [vmem:[#allocation8 + $0xe8] sm:$0xff]
    %v369 = vld [vmem:[#allocation8 + $0xf0] sm:$0xff]
    %v370 = vld [vmem:[#allocation8 + $0xf8] sm:$0xff]
    %v371 = vunpack.c.0.s8 %v339
    %v372 = vunpack.c.1.s8 %v339
    %v373 = vunpack.c.2.s8 %v339
    %v374 = vunpack.c.3.s8 %v339
    %v375 = vunpack.c.0.s8 %v340
    %v376 = vunpack.c.1.s8 %v340
    %v377 = vunpack.c.2.s8 %v340
    %v378 = vunpack.c.3.s8 %v340
    %v379 = vunpack.c.0.s8 %v341
    %v380 = vunpack.c.1.s8 %v341
    %v381 = vunpack.c.2.s8 %v341
    %v382 = vunpack.c.3.s8 %v341
    %v383 = vunpack.c.0.s8 %v342
    %v384 = vunpack.c.1.s8 %v342
    %v385 = vunpack.c.2.s8 %v342
    %v386 = vunpack.c.3.s8 %v342
    %v387 = vunpack.c.0.s8 %v343
    %v388 = vunpack.c.1.s8 %v343
    %v389 = vunpack.c.2.s8 %v343
    %v390 = vunpack.c.3.s8 %v343
    %v391 = vunpack.c.0.s8 %v344
    %v392 = vunpack.c.1.s8 %v344
    %v393 = vunpack.c.2.s8 %v344
    %v394 = vunpack.c.3.s8 %v344
    %v395 = vunpack.c.0.s8 %v345
    %v396 = vunpack.c.1.s8 %v345
    %v397 = vunpack.c.2.s8 %v345
    %v398 = vunpack.c.3.s8 %v345
    %v399 = vunpack.c.0.s8 %v346
    %v400 = vunpack.c.1.s8 %v346
    %v401 = vunpack.c.2.s8 %v346
    %v402 = vunpack.c.3.s8 %v346
    %v403 = vunpack.c.0.s8 %v347
    %v404 = vunpack.c.1.s8 %v347
    %v405 = vunpack.c.2.s8 %v347
    %v406 = vunpack.c.3.s8 %v347
    %v407 = vunpack.c.0.s8 %v348
    %v408 = vunpack.c.1.s8 %v348
    %v409 = vunpack.c.2.s8 %v348
    %v410 = vunpack.c.3.s8 %v348
    %v411 = vunpack.c.0.s8 %v349
    %v412 = vunpack.c.1.s8 %v349
    %v413 = vunpack.c.2.s8 %v349
    %v414 = vunpack.c.3.s8 %v349
    %v415 = vunpack.c.0.s8 %v350
    %v416 = vunpack.c.1.s8 %v350
    %v417 = vunpack.c.2.s8 %v350
    %v418 = vunpack.c.3.s8 %v350
    %v419 = vunpack.c.0.s8 %v351
    %v420 = vunpack.c.1.s8 %v351
    %v421 = vunpack.c.2.s8 %v351
    %v422 = vunpack.c.3.s8 %v351
    %v423 = vunpack.c.0.s8 %v352
    %v424 = vunpack.c.1.s8 %v352
    %v425 = vunpack.c.2.s8 %v352
    %v426 = vunpack.c.3.s8 %v352
    %v427 = vunpack.c.0.s8 %v353
    %v428 = vunpack.c.1.s8 %v353
    %v429 = vunpack.c.2.s8 %v353
    %v430 = vunpack.c.3.s8 %v353
    %v431 = vunpack.c.0.s8 %v354
    %v432 = vunpack.c.1.s8 %v354
    %v433 = vunpack.c.2.s8 %v354
    %v434 = vunpack.c.3.s8 %v354
    %v435 = vunpack.c.0.s8 %v355
    %v436 = vunpack.c.1.s8 %v355
    %v437 = vunpack.c.2.s8 %v355
    %v438 = vunpack.c.3.s8 %v355
    %v439 = vunpack.c.0.s8 %v356
    %v440 = vunpack.c.1.s8 %v356
    %v441 = vunpack.c.2.s8 %v356
    %v442 = vunpack.c.3.s8 %v356
    %v443 = vunpack.c.0.s8 %v357
    %v444 = vunpack.c.1.s8 %v357
    %v445 = vunpack.c.2.s8 %v357
    %v446 = vunpack.c.3.s8 %v357
    %v447 = vunpack.c.0.s8 %v358
    %v448 = vunpack.c.1.s8 %v358
    %v449 = vunpack.c.2.s8 %v358
    %v450 = vunpack.c.3.s8 %v358
    %v451 = vunpack.c.0.s8 %v359
    %v452 = vunpack.c.1.s8 %v359
    %v453 = vunpack.c.2.s8 %v359
    %v454 = vunpack.c.3.s8 %v359
    %v455 = vunpack.c.0.s8 %v360
    %v456 = vunpack.c.1.s8 %v360
    %v457 = vunpack.c.2.s8 %v360
    %v458 = vunpack.c.3.s8 %v360
    %v459 = vunpack.c.0.s8 %v361
    %v460 = vunpack.c.1.s8 %v361
    %v461 = vunpack.c.2.s8 %v361
    %v462 = vunpack.c.3.s8 %v361
    %v463 = vunpack.c.0.s8 %v362
    %v464 = vunpack.c.1.s8 %v362
    %v465 = vunpack.c.2.s8 %v362
    %v466 = vunpack.c.3.s8 %v362
    %v467 = vunpack.c.0.s8 %v363
    %v468 = vunpack.c.1.s8 %v363
    %v469 = vunpack.c.2.s8 %v363
    %v470 = vunpack.c.3.s8 %v363
    %v471 = vunpack.c.0.s8 %v364
    %v472 = vunpack.c.1.s8 %v364
    %v473 = vunpack.c.2.s8 %v364
    %v474 = vunpack.c.3.s8 %v364
    %v475 = vunpack.c.0.s8 %v365
    %v476 = vunpack.c.1.s8 %v365
    %v477 = vunpack.c.2.s8 %v365
    %v478 = vunpack.c.3.s8 %v365
    %v479 = vunpack.c.0.s8 %v366
    %v480 = vunpack.c.1.s8 %v366
    %v481 = vunpack.c.2.s8 %v366
    %v482 = vunpack.c.3.s8 %v366
    %v483 = vunpack.c.0.s8 %v367
    %v484 = vunpack.c.1.s8 %v367
    %v485 = vunpack.c.2.s8 %v367
    %v486 = vunpack.c.3.s8 %v367
    %v487 = vunpack.c.0.s8 %v368
    %v488 = vunpack.c.1.s8 %v368
    %v489 = vunpack.c.2.s8 %v368
    %v490 = vunpack.c.3.s8 %v368
    %v491 = vunpack.c.0.s8 %v369
    %v492 = vunpack.c.1.s8 %v369
    %v493 = vunpack.c.2.s8 %v369
    %v494 = vunpack.c.3.s8 %v369
    %v495 = vunpack.c.0.s8 %v370
    %v496 = vunpack.c.1.s8 %v370
    %v497 = vunpack.c.2.s8 %v370
    %v498 = vunpack.c.3.s8 %v370
    %v499 = vcvt.s32.f32 %v371
    %v500 = vcvt.s32.f32 %v372
    %v501 = vcvt.s32.f32 %v373
    %v502 = vcvt.s32.f32 %v374
    %v503 = vcvt.s32.f32 %v375
    %v504 = vcvt.s32.f32 %v376
    %v505 = vcvt.s32.f32 %v377
    %v506 = vcvt.s32.f32 %v378
    %v507 = vcvt.s32.f32 %v379
    %v508 = vcvt.s32.f32 %v380
    %v509 = vcvt.s32.f32 %v381
    %v510 = vcvt.s32.f32 %v382
    %v511 = vcvt.s32.f32 %v383
    %v512 = vcvt.s32.f32 %v384
    %v513 = vcvt.s32.f32 %v385
    %v514 = vcvt.s32.f32 %v386
    %v515 = vcvt.s32.f32 %v387
    %v516 = vcvt.s32.f32 %v388
    %v517 = vcvt.s32.f32 %v389
    %v518 = vcvt.s32.f32 %v390
    %v519 = vcvt.s32.f32 %v391
    %v520 = vcvt.s32.f32 %v392
    %v521 = vcvt.s32.f32 %v393
    %v522 = vcvt.s32.f32 %v394
    %v523 = vcvt.s32.f32 %v395
    %v524 = vcvt.s32.f32 %v396
    %v525 = vcvt.s32.f32 %v397
    %v526 = vcvt.s32.f32 %v398
    %v527 = vcvt.s32.f32 %v399
    %v528 = vcvt.s32.f32 %v400
    %v529 = vcvt.s32.f32 %v401
    %v530 = vcvt.s32.f32 %v402
    %v531 = vcvt.s32.f32 %v403
    %v532 = vcvt.s32.f32 %v404
    %v533 = vcvt.s32.f32 %v405
    %v534 = vcvt.s32.f32 %v406
    %v535 = vcvt.s32.f32 %v407
    %v536 = vcvt.s32.f32 %v408
    %v537 = vcvt.s32.f32 %v409
    %v538 = vcvt.s32.f32 %v410
    %v539 = vcvt.s32.f32 %v411
    %v540 = vcvt.s32.f32 %v412
    %v541 = vcvt.s32.f32 %v413
    %v542 = vcvt.s32.f32 %v414
    %v543 = vcvt.s32.f32 %v415
    %v544 = vcvt.s32.f32 %v416
    %v545 = vcvt.s32.f32 %v417
    %v546 = vcvt.s32.f32 %v418
    %v547 = vcvt.s32.f32 %v419
    %v548 = vcvt.s32.f32 %v420
    %v549 = vcvt.s32.f32 %v421
    %v550 = vcvt.s32.f32 %v422
    %v551 = vcvt.s32.f32 %v423
    %v552 = vcvt.s32.f32 %v424
    %v553 = vcvt.s32.f32 %v425
    %v554 = vcvt.s32.f32 %v426
    %v555 = vcvt.s32.f32 %v427
    %v556 = vcvt.s32.f32 %v428
    %v557 = vcvt.s32.f32 %v429
    %v558 = vcvt.s32.f32 %v430
    %v559 = vcvt.s32.f32 %v431
    %v560 = vcvt.s32.f32 %v432
    %v561 = vcvt.s32.f32 %v433
    %v562 = vcvt.s32.f32 %v434
    %v563 = vcvt.s32.f32 %v435
    %v564 = vcvt.s32.f32 %v436
    %v565 = vcvt.s32.f32 %v437
    %v566 = vcvt.s32.f32 %v438
    %v567 = vcvt.s32.f32 %v439
    %v568 = vcvt.s32.f32 %v440
    %v569 = vcvt.s32.f32 %v441
    %v570 = vcvt.s32.f32 %v442
    %v571 = vcvt.s32.f32 %v443
    %v572 = vcvt.s32.f32 %v444
    %v573 = vcvt.s32.f32 %v445
    %v574 = vcvt.s32.f32 %v446
    %v575 = vcvt.s32.f32 %v447
    %v576 = vcvt.s32.f32 %v448
    %v577 = vcvt.s32.f32 %v449
    %v578 = vcvt.s32.f32 %v450
    %v579 = vcvt.s32.f32 %v451
    %v580 = vcvt.s32.f32 %v452
    %v581 = vcvt.s32.f32 %v453
    %v582 = vcvt.s32.f32 %v454
    %v583 = vcvt.s32.f32 %v455
    %v584 = vcvt.s32.f32 %v456
    %v585 = vcvt.s32.f32 %v457
    %v586 = vcvt.s32.f32 %v458
    %v587 = vcvt.s32.f32 %v459
    %v588 = vcvt.s32.f32 %v460
    %v589 = vcvt.s32.f32 %v461
    %v590 = vcvt.s32.f32 %v462
    %v591 = vcvt.s32.f32 %v463
    %v592 = vcvt.s32.f32 %v464
    %v593 = vcvt.s32.f32 %v465
    %v594 = vcvt.s32.f32 %v466
    %v595 = vcvt.s32.f32 %v467
    %v596 = vcvt.s32.f32 %v468
    %v597 = vcvt.s32.f32 %v469
    %v598 = vcvt.s32.f32 %v470
    %v599 = vcvt.s32.f32 %v471
    %v600 = vcvt.s32.f32 %v472
    %v601 = vcvt.s32.f32 %v473
    %v602 = vcvt.s32.f32 %v474
    %v603 = vcvt.s32.f32 %v475
    %v604 = vcvt.s32.f32 %v476
    %v605 = vcvt.s32.f32 %v477
    %v606 = vcvt.s32.f32 %v478
    %v607 = vcvt.s32.f32 %v479
    %v608 = vcvt.s32.f32 %v480
    %v609 = vcvt.s32.f32 %v481
    %v610 = vcvt.s32.f32 %v482
    %v611 = vcvt.s32.f32 %v483
    %v612 = vcvt.s32.f32 %v484
    %v613 = vcvt.s32.f32 %v485
    %v614 = vcvt.s32.f32 %v486
    %v615 = vcvt.s32.f32 %v487
    %v616 = vcvt.s32.f32 %v488
    %v617 = vcvt.s32.f32 %v489
    %v618 = vcvt.s32.f32 %v490
    %v619 = vcvt.s32.f32 %v491
    %v620 = vcvt.s32.f32 %v492
    %v621 = vcvt.s32.f32 %v493
    %v622 = vcvt.s32.f32 %v494
    %v623 = vcvt.s32.f32 %v495
    %v624 = vcvt.s32.f32 %v496
    %v625 = vcvt.s32.f32 %v497
    %v626 = vcvt.s32.f32 %v498
    %v627 = vpack.c.bf16 %v500, %v499
    %v628 = vpack.c.bf16 %v502, %v501
    %v629 = vpack.c.bf16 %v504, %v503
    %v630 = vpack.c.bf16 %v506, %v505
    %v631 = vpack.c.bf16 %v508, %v507
    %v632 = vpack.c.bf16 %v510, %v509
    %v633 = vpack.c.bf16 %v512, %v511
    %v634 = vpack.c.bf16 %v514, %v513
    %v635 = vpack.c.bf16 %v516, %v515
    %v636 = vpack.c.bf16 %v518, %v517
    %v637 = vpack.c.bf16 %v520, %v519
    %v638 = vpack.c.bf16 %v522, %v521
    %v639 = vpack.c.bf16 %v524, %v523
    %v640 = vpack.c.bf16 %v526, %v525
    %v641 = vpack.c.bf16 %v528, %v527
    %v642 = vpack.c.bf16 %v530, %v529
    %v643 = vpack.c.bf16 %v532, %v531
    %v644 = vpack.c.bf16 %v534, %v533
    %v645 = vpack.c.bf16 %v536, %v535
    %v646 = vpack.c.bf16 %v538, %v537
    %v647 = vpack.c.bf16 %v540, %v539
    %v648 = vpack.c.bf16 %v542, %v541
    %v649 = vpack.c.bf16 %v544, %v543
    %v650 = vpack.c.bf16 %v546, %v545
    %v651 = vpack.c.bf16 %v548, %v547
    %v652 = vpack.c.bf16 %v550, %v549
    %v653 = vpack.c.bf16 %v552, %v551
    %v654 = vpack.c.bf16 %v554, %v553
    %v655 = vpack.c.bf16 %v556, %v555
    %v656 = vpack.c.bf16 %v558, %v557
    %v657 = vpack.c.bf16 %v560, %v559
    %v658 = vpack.c.bf16 %v562, %v561
    %v659 = vpack.c.bf16 %v564, %v563
    %v660 = vpack.c.bf16 %v566, %v565
    %v661 = vpack.c.bf16 %v568, %v567
    %v662 = vpack.c.bf16 %v570, %v569
    %v663 = vpack.c.bf16 %v572, %v571
    %v664 = vpack.c.bf16 %v574, %v573
    %v665 = vpack.c.bf16 %v576, %v575
    %v666 = vpack.c.bf16 %v578, %v577
    %v667 = vpack.c.bf16 %v580, %v579
    %v668 = vpack.c.bf16 %v582, %v581
    %v669 = vpack.c.bf16 %v584, %v583
    %v670 = vpack.c.bf16 %v586, %v585
    %v671 = vpack.c.bf16 %v588, %v587
    %v672 = vpack.c.bf16 %v590, %v589
    %v673 = vpack.c.bf16 %v592, %v591
    %v674 = vpack.c.bf16 %v594, %v593
    %v675 = vpack.c.bf16 %v596, %v595
    %v676 = vpack.c.bf16 %v598, %v597
    %v677 = vpack.c.bf16 %v600, %v599
    %v678 = vpack.c.bf16 %v602, %v601
    %v679 = vpack.c.bf16 %v604, %v603
    %v680 = vpack.c.bf16 %v606, %v605
    %v681 = vpack.c.bf16 %v608, %v607
    %v682 = vpack.c.bf16 %v610, %v609
    %v683 = vpack.c.bf16 %v612, %v611
    %v684 = vpack.c.bf16 %v614, %v613
    %v685 = vpack.c.bf16 %v616, %v615
    %v686 = vpack.c.bf16 %v618, %v617
    %v687 = vpack.c.bf16 %v620, %v619
    %v688 = vpack.c.bf16 %v622, %v621
    %v689 = vpack.c.bf16 %v624, %v623
    %v690 = vpack.c.bf16 %v626, %v625
    %v691 = vpack.c.bf16 %v331, %v323
    %v692 = vpack.c.bf16 %v332, %v324
    %v693 = vpack.c.bf16 %v333, %v325
    %v694 = vpack.c.bf16 %v334, %v326
    %v695 = vpack.c.bf16 %v335, %v327
    %v696 = vpack.c.bf16 %v336, %v328
    %v697 = vpack.c.bf16 %v337, %v329
    %v698 = vpack.c.bf16 %v338, %v330
    %699 = vmatpush.bf16.msra.mxu0 %v634
    %700 = vmatpush.bf16.msra.mxu0 %v633
    %701 = vmatpush.bf16.msra.mxu0 %v632
    %702 = vmatpush.bf16.msra.mxu0 %v631
    %703 = vmatpush.bf16.msra.mxu0 %v630
    %704 = vmatpush.bf16.msra.mxu0 %v629
    %705 = vmatpush.bf16.msra.mxu0 %v628
    %706 = vmatpush.bf16.msra.mxu0 %v627
    %707 = vmatmul.bf16.gmra.mxu0 %v691
    %v708 = vpop.f32.mrf.mxu0
    %v709 = vadd.f32 0.0, %v708
    %v710 = vpop.f32.mrf.mxu0
    %v711 = vadd.f32 0.0, %v710
    %712 = vdwg.mxu0
    %713 = vmatpush.bf16.msra.mxu0 %v642
    %714 = vmatpush.bf16.msra.mxu0 %v641
    %715 = vmatpush.bf16.msra.mxu0 %v640
    %716 = vmatpush.bf16.msra.mxu0 %v639
    %717 = vmatpush.bf16.msra.mxu0 %v638
    %718 = vmatpush.bf16.msra.mxu0 %v637
    %719 = vmatpush.bf16.msra.mxu0 %v636
    %720 = vmatpush.bf16.msra.mxu0 %v635
    %721 = vmatmul.bf16.gmra.mxu0 %v692
    %v722 = vpop.f32.mrf.mxu0
    %v723 = vadd.f32 %v709, %v722
    %v724 = vpop.f32.mrf.mxu0
    %v725 = vadd.f32 %v711, %v724
    %726 = vdwg.mxu0
    %727 = vmatpush.bf16.msra.mxu0 %v650
    %728 = vmatpush.bf16.msra.mxu0 %v649
    %729 = vmatpush.bf16.msra.mxu0 %v648
    %730 = vmatpush.bf16.msra.mxu0 %v647
    %731 = vmatpush.bf16.msra.mxu0 %v646
    %732 = vmatpush.bf16.msra.mxu0 %v645
    %733 = vmatpush.bf16.msra.mxu0 %v644
    %734 = vmatpush.bf16.msra.mxu0 %v643
    %735 = vmatmul.bf16.gmra.mxu0 %v693
    %v736 = vpop.f32.mrf.mxu0
    %v737 = vadd.f32 %v723, %v736
    %v738 = vpop.f32.mrf.mxu0
    %v739 = vadd.f32 %v725, %v738
    %740 = vdwg.mxu0
    %741 = vmatpush.bf16.msra.mxu0 %v658
    %742 = vmatpush.bf16.msra.mxu0 %v657
    %743 = vmatpush.bf16.msra.mxu0 %v656
    %744 = vmatpush.bf16.msra.mxu0 %v655
    %745 = vmatpush.bf16.msra.mxu0 %v654
    %746 = vmatpush.bf16.msra.mxu0 %v653
    %747 = vmatpush.bf16.msra.mxu0 %v652
    %748 = vmatpush.bf16.msra.mxu0 %v651
    %749 = vmatmul.bf16.gmra.mxu0 %v694
    %v750 = vpop.f32.mrf.mxu0
    %v751 = vadd.f32 %v737, %v750
    %v752 = vpop.f32.mrf.mxu0
    %v753 = vadd.f32 %v739, %v752
    %754 = vdwg.mxu0
    %755 = vmatpush.bf16.msra.mxu0 %v666
    %756 = vmatpush.bf16.msra.mxu0 %v665
    %757 = vmatpush.bf16.msra.mxu0 %v664
    %758 = vmatpush.bf16.msra.mxu0 %v663
    %759 = vmatpush.bf16.msra.mxu0 %v662
    %760 = vmatpush.bf16.msra.mxu0 %v661
    %761 = vmatpush.bf16.msra.mxu0 %v660
    %762 = vmatpush.bf16.msra.mxu0 %v659
    %763 = vmatmul.bf16.gmra.mxu0 %v695
    %v764 = vpop.f32.mrf.mxu0
    %v765 = vadd.f32 %v751, %v764
    %v766 = vpop.f32.mrf.mxu0
    %v767 = vadd.f32 %v753, %v766
    %768 = vdwg.mxu0
    %769 = vmatpush.bf16.msra.mxu0 %v674
    %770 = vmatpush.bf16.msra.mxu0 %v673
    %771 = vmatpush.bf16.msra.mxu0 %v672
    %772 = vmatpush.bf16.msra.mxu0 %v671
    %773 = vmatpush.bf16.msra.mxu0 %v670
    %774 = vmatpush.bf16.msra.mxu0 %v669
    %775 = vmatpush.bf16.msra.mxu0 %v668
    %776 = vmatpush.bf16.msra.mxu0 %v667
    %777 = vmatmul.bf16.gmra.mxu0 %v696
    %v778 = vpop.f32.mrf.mxu0
    %v779 = vadd.f32 %v765, %v778
    %v780 = vpop.f32.mrf.mxu0
    %v781 = vadd.f32 %v767, %v780
    %782 = vdwg.mxu0
    %783 = vmatpush.bf16.msra.mxu0 %v682
    %784 = vmatpush.bf16.msra.mxu0 %v681
    %785 = vmatpush.bf16.msra.mxu0 %v680
    %786 = vmatpush.bf16.msra.mxu0 %v679
    %787 = vmatpush.bf16.msra.mxu0 %v678
    %788 = vmatpush.bf16.msra.mxu0 %v677
    %789 = vmatpush.bf16.msra.mxu0 %v676
    %790 = vmatpush.bf16.msra.mxu0 %v675
    %791 = vmatmul.bf16.gmra.mxu0 %v697
    %v792 = vpop.f32.mrf.mxu0
    %v793 = vadd.f32 %v779, %v792
    %v794 = vpop.f32.mrf.mxu0
    %v795 = vadd.f32 %v781, %v794
    %796 = vdwg.mxu0
    %797 = vmatpush.bf16.msra.mxu0 %v690
    %798 = vmatpush.bf16.msra.mxu0 %v689
    %799 = vmatpush.bf16.msra.mxu0 %v688
    %800 = vmatpush.bf16.msra.mxu0 %v687
    %801 = vmatpush.bf16.msra.mxu0 %v686
    %802 = vmatpush.bf16.msra.mxu0 %v685
    %803 = vmatpush.bf16.msra.mxu0 %v684
    %804 = vmatpush.bf16.msra.mxu0 %v683
    %805 = vmatmul.bf16.gmra.mxu0 %v698
    %v806 = vpop.f32.mrf.mxu0
    %v807 = vadd.f32 %v793, %v806
    %v808 = vpop.f32.mrf.mxu0
    %v809 = vadd.f32 %v795, %v808
    %810 = vdwg.mxu0
    %v811 = vld [vmem:[%s4] sm:$0x1]
    %v813 = vperm.slane %v811, 0
    %v815 = vmul.f32 %v807, %v813
    %v816 = vmul.f32 %v809, %v813
    %v817 = vld [vmem:[%s5] sm:$0x1]
    %v819 = vperm.slane %v817, 0
    %v821 = vadd.f32 %v815, %v819
    %v822 = vadd.f32 %v816, %v819
    %v823 = vtanh.pop %v821
    %v824 = vtanh.pop %v822
    %825 = vst [vmem:[#allocation10] sm:$0xff] %v823
    %826 = vst [vmem:[#allocation10 + $0x8] sm:$0xff] %v824
    // Predicated region
    $region42: #{tpu_custom_call.1} parent=1 // pred_check
      _
    $region43: #{tpu_custom_call.1} parent=1 // pred_check_branch
      %828 = sbr.rel (0) target = $region45
    $region44: #{tpu_custom_call.1} parent=1 // pred_region
      %830 = vsyncadd [#allocation4], 0
      %s831 = sshll.u32 [#allocation10], 4
      %s832 = int_to_ptr.vmem [resolvable:$true] %s831
      %s833 = sshll.u32 %s6, 4
      %s834 = int_to_ptr.hbm [resolvable:$true] %s833
      %839 = dma.vmem_to_hbm [thread:$0]  %s832, 256, %s834, [#allocation4], 128, 128, 8
    $region45: #{tpu_custom_call.1} parent=1 // pred_fallthru
      _
    // Predicated region
    $region46: #{tpu_custom_call.1} parent=1 // pred_check
      _
    $region47: #{tpu_custom_call.1} parent=1 // pred_check_branch
      %841 = sbr.rel (0) target = $region49
    $region48: #{tpu_custom_call.1} parent=1 // pred_region
      %843 = dma.done [#allocation4], 256
    $region49: #{tpu_custom_call.1} parent=1 // pred_fallthru
      _
    %844 = vsyncpa [#allocation3], 1
    %845 = vsyncpa [#allocation6], 1
    %846 = vsyncpa [#allocation9], 1
    %847 = vsyncpa [#allocation4], 1

</llo_original>
